<compile_context>
chip_gen: v7x
topology: tpu7x:2x2x1
jax: 0.10.0
libtpu: 0.0.40
codegen_flags: <defaults>
</compile_context>

<pallas_src>
import jax
import jax.numpy as jnp
from jax.experimental import pallas as pl
from jax.experimental.pallas import tpu as pltpu

# ---- problem sizes (small, consistent with the module: hid_dim % n_heads == 0) ----
BATCH = 2
SEQ = 16
HID_DIM = 128
N_HEADS = 8
HEAD_DIM = HID_DIM // N_HEADS          # 16
HS = N_HEADS * SEQ                     # 128: all-heads key axis, exactly one lane tile
SCALE = float(HEAD_DIM) ** 0.5         # torch.sqrt(FloatTensor([hid_dim // n_heads]))


def _self_attention_kernel(q_ref, k_ref, v_ref, wqkv_ref, bqkv_ref, mask_ref,
                           wo_ref, bo_ref, o_ref):
    # Single invocation: whole (tiny) problem resident in VMEM, everything lane-dense.
    q_in = q_ref[...].astype(jnp.bfloat16)            # [B*S, D]
    k_in = k_ref[...].astype(jnp.bfloat16)
    v_in = v_ref[...].astype(jnp.bfloat16)

    # QKV projections with batch folded into rows: three [B*S,D]@[D,D] MXU matmuls,
    # f32 accumulation, bias add in f32.  1/sqrt(head_dim) is folded into w_q/b_q.
    q = (jnp.dot(q_in, wqkv_ref[0], preferred_element_type=jnp.float32)
         + bqkv_ref[0]).astype(jnp.bfloat16)
    k = (jnp.dot(k_in, wqkv_ref[1], preferred_element_type=jnp.float32)
         + bqkv_ref[1]).astype(jnp.bfloat16)
    v = (jnp.dot(v_in, wqkv_ref[2], preferred_element_type=jnp.float32)
         + bqkv_ref[2]).astype(jnp.bfloat16)

    qb = q.reshape(BATCH, SEQ, HID_DIM)               # split rows back into batches
    kb = k.reshape(BATCH, SEQ, HID_DIM)
    vb = v.reshape(BATCH, SEQ, HID_DIM)

    # Block-diagonal K / V: row r belongs to head r // S, feature column d belongs
    # to head d // HEAD_DIM (0/1 mask precomputed in the wrapper).
    mask = mask_ref[...]                                          # [HS, D] bf16
    mask_b = jnp.broadcast_to(mask[None], (BATCH, HS, HID_DIM))   # hoisted, reused 3x
    k_bd = jnp.concatenate([kb] * N_HEADS, axis=1) * mask_b       # [B, HS, D]
    v_bd = jnp.concatenate([vb] * N_HEADS, axis=1) * mask_b       # [B, HS, D]

    # All heads' energies per batch in one lane-dense matmul (no transpose
    # materialised): energy[b, s, h*S + kk] = Q_h[b,s] . K_h[b,kk] / scale.
    energy = jnp.einsum("bsd,bkd->bsk", qb, k_bd,
                        preferred_element_type=jnp.float32)       # [B, S, HS] f32

    # Segmented (per-head) softmax in f32; a global row max is exact by shift
    # invariance of softmax.
    m = jnp.max(energy, axis=-1, keepdims=True)
    p = jnp.exp(energy - m)
    p_bf = p.astype(jnp.bfloat16)                                 # [B, S, HS]

    # Fused context / denominator: ONE matmul against [v_blockdiag | head_mask].
    rhs = jnp.concatenate([v_bd, mask_b], axis=-1)                # [B, HS, 2D] bf16
    ctx_denom = jnp.einsum("bsk,bke->bse", p_bf, rhs,
                           preferred_element_type=jnp.float32)    # [B, S, 2D] f32
    ctx = ctx_denom[..., :HID_DIM]      # unnormalised head outputs, concat over heads
    denom = ctx_denom[..., HID_DIM:]    # per-head softmax denominators, broadcast to D
    attn_out = ctx * pl.reciprocal(denom, approx=True)            # [B, S, D]

    # Output projection, batch folded back into rows: one [B*S,D]@[D,D] matmul and
    # a lane-dense 128-wide store.
    out = jnp.dot(attn_out.reshape(BATCH * SEQ, HID_DIM).astype(jnp.bfloat16),
                  wo_ref[...], preferred_element_type=jnp.float32) + bo_ref[...]
    o_ref[...] = out.astype(o_ref.dtype)


def pack_params(params):
    """One-time parameter packing — deliberately OUTSIDE the per-call hot path."""
    wq, bq, wk, bk, wv, bv, wo, bo = params
    inv_scale = jnp.float32(1.0 / SCALE)
    w_qkv = jnp.stack([wq * inv_scale, wk, wv]).astype(jnp.bfloat16)   # [3, D, D]
    b_qkv = jnp.stack([bq * inv_scale, bk, bv]).astype(jnp.float32)    # [3, 1, D]
    # 0/1 head-layout mask for the block-diagonal K/V operands.
    row_head = jnp.arange(HS, dtype=jnp.int32)[:, None] // SEQ
    col_head = jnp.arange(HID_DIM, dtype=jnp.int32)[None, :] // HEAD_DIM
    head_mask = (row_head == col_head).astype(jnp.bfloat16)            # [HS, D]
    return (w_qkv, b_qkv, head_mask,
            wo.astype(jnp.bfloat16), bo.astype(jnp.float32))


@jax.jit
def self_attention_pallas(query, key, value, packed):
    w_qkv, b_qkv, head_mask, wo_bf, bo_f32 = packed
    B, S, D = query.shape
    n = B * S
    # Reshapes of contiguous arrays are free (bitcasts); no other per-call prep.
    q2 = query.reshape(n, D)
    k2 = key.reshape(n, D)
    v2 = value.reshape(n, D)

    def full(shape):
        return pl.BlockSpec(shape, lambda i, _s=len(shape): (0,) * _s)

    out = pl.pallas_call(
        _self_attention_kernel,
        out_shape=jax.ShapeDtypeStruct((n, D), jnp.float32),
        grid=(1,),                       # single invocation: B folded into rows
        in_specs=[
            full((n, D)), full((n, D)), full((n, D)),      # q, k, v
            full((3, D, D)), full((3, 1, D)),              # packed W_qkv, b_qkv
            full((HS, D)),                                 # head-layout mask
            full((D, D)), full((1, D)),                    # W_o, b_o
        ],
        out_specs=full((n, D)),
        compiler_params=pltpu.CompilerParams(
            dimension_semantics=("arbitrary",)),
    )(q2, k2, v2, w_qkv, b_qkv, head_mask, wo_bf, bo_f32)
    return out.reshape(B, S, D)


def self_attention_reference(query, key, value, params):
    """Pure-JAX f32 reference mirroring the PyTorch forward (mask=None, eval)."""
    wq, bq, wk, bk, wv, bv, wo, bo = params
    B, S, D = query.shape
    Q = query @ wq + bq
    K = key @ wk + bk
    V = value @ wv + bv
    def split(x):
        return x.reshape(B, S, N_HEADS, HEAD_DIM).transpose(0, 2, 1, 3)  # [B,H,S,hd]
    Qh, Kh, Vh = split(Q), split(K), split(V)
    energy = jnp.einsum("bhqd,bhkd->bhqk", Qh, Kh) / SCALE
    attn = jax.nn.softmax(energy, axis=-1)
    x = jnp.einsum("bhqk,bhkd->bhqd", attn, Vh)
    x = x.transpose(0, 2, 1, 3).reshape(B, S, D)
    return x @ wo + bo


def init_params(rng):
    """Deterministic synthetic parameters; weights stored [in_dim, out_dim]."""
    keys = jax.random.split(rng, 8)
    bound = 1.0 / (HID_DIM ** 0.5)  # matches nn.Linear's uniform init range
    def w(k):
        return jax.random.uniform(k, (HID_DIM, HID_DIM), jnp.float32, -bound, bound)
    def b(k):
        return jax.random.uniform(k, (1, HID_DIM), jnp.float32, -bound, bound)
    return (w(keys[0]), b(keys[1]),   # w_q, b_q
            w(keys[2]), b(keys[3]),   # w_k, b_k
            w(keys[4]), b(keys[5]),   # w_v, b_v
            w(keys[6]), b(keys[7]))   # fc,  b_fc


if __name__ == "__main__":
    root = jax.random.PRNGKey(0)
    k_q, k_k, k_v, k_p = jax.random.split(root, 4)

    query = jax.random.normal(k_q, (BATCH, SEQ, HID_DIM), jnp.float32)
    key = jax.random.normal(k_k, (BATCH, SEQ, HID_DIM), jnp.float32)
    value = jax.random.normal(k_v, (BATCH, SEQ, HID_DIM), jnp.float32)
    params = init_params(k_p)

    packed = pack_params(params)   # one-time packing, outside the forward hot path

    out = self_attention_pallas(query, key, value, packed)
    out = jax.block_until_ready(out)

    ref = self_attention_reference(query, key, value, params)
    assert out.shape == (BATCH, SEQ, HID_DIM)
    # bf16 MXU operands + approx reciprocal -> compare at bf16-level tolerance.
    assert jnp.allclose(out, ref, atol=2e-2, rtol=2e-2), "mismatch vs reference"

    print("KERNEL_OK")
</pallas_src>

<mosaic_0001>
module attributes {stable_mosaic.version = 11 : i64} {
  func.func @_self_attention_kernel(%arg0: i32, %arg1: memref<32x128xf32, #tpu.memory_space<vmem>>, %arg2: memref<32x128xf32, #tpu.memory_space<vmem>>, %arg3: memref<32x128xf32, #tpu.memory_space<vmem>>, %arg4: memref<3x128x128xbf16, #tpu.memory_space<vmem>>, %arg5: memref<3x1x128xf32, #tpu.memory_space<vmem>>, %arg6: memref<128x128xbf16, #tpu.memory_space<vmem>>, %arg7: memref<128x128xbf16, #tpu.memory_space<vmem>>, %arg8: memref<1x128xf32, #tpu.memory_space<vmem>>, %arg9: memref<32x128xf32, #tpu.memory_space<vmem>>) attributes {dimension_semantics = [#tpu.dimension_semantics<arbitrary>], iteration_bounds = array<i64: 1>, scalar_prefetch = 0 : i64, scratch_operands = 0 : i64, tpu.core_type = #tpu.core_type<tc>, window_params = [{pipeline_mode = #tpu.pipeline_mode<synchronous>, transform_indices = @transform_0, window_bounds = array<i64: 32, 128>}, {pipeline_mode = #tpu.pipeline_mode<synchronous>, transform_indices = @transform_1, window_bounds = array<i64: 32, 128>}, {pipeline_mode = #tpu.pipeline_mode<synchronous>, transform_indices = @transform_2, window_bounds = array<i64: 32, 128>}, {pipeline_mode = #tpu.pipeline_mode<synchronous>, transform_indices = @transform_3, window_bounds = array<i64: 3, 128, 128>}, {pipeline_mode = #tpu.pipeline_mode<synchronous>, transform_indices = @transform_4, window_bounds = array<i64: 3, 1, 128>}, {pipeline_mode = #tpu.pipeline_mode<synchronous>, transform_indices = @transform_5, window_bounds = array<i64: 128, 128>}, {pipeline_mode = #tpu.pipeline_mode<synchronous>, transform_indices = @transform_6, window_bounds = array<i64: 128, 128>}, {pipeline_mode = #tpu.pipeline_mode<synchronous>, transform_indices = @transform_7, window_bounds = array<i64: 1, 128>}, {pipeline_mode = #tpu.pipeline_mode<synchronous>, transform_indices = @transform_8, window_bounds = array<i64: 32, 128>}]} {
    %c0 = arith.constant 0 : index
    %c0_0 = arith.constant 0 : index
    %0 = vector.load %arg1[%c0, %c0_0] : memref<32x128xf32, #tpu.memory_space<vmem>>, vector<32x128xf32>
    %1 = arith.truncf %0 : vector<32x128xf32> to vector<32x128xbf16>
    %c0_1 = arith.constant 0 : index
    %c0_2 = arith.constant 0 : index
    %2 = vector.load %arg2[%c0_1, %c0_2] : memref<32x128xf32, #tpu.memory_space<vmem>>, vector<32x128xf32>
    %3 = arith.truncf %2 : vector<32x128xf32> to vector<32x128xbf16>
    %c0_3 = arith.constant 0 : index
    %c0_4 = arith.constant 0 : index
    %4 = vector.load %arg3[%c0_3, %c0_4] : memref<32x128xf32, #tpu.memory_space<vmem>>, vector<32x128xf32>
    %5 = arith.truncf %4 : vector<32x128xf32> to vector<32x128xbf16>
    %c0_5 = arith.constant 0 : index
    %c0_6 = arith.constant 0 : index
    %c0_7 = arith.constant 0 : index
    %6 = vector.load %arg4[%c0_5, %c0_6, %c0_7] : memref<3x128x128xbf16, #tpu.memory_space<vmem>>, vector<1x128x128xbf16>
    %7 = vector.shape_cast %6 : vector<1x128x128xbf16> to vector<128x128xbf16>
    %cst = arith.constant dense<0.000000e+00> : vector<32x128xf32>
    %8 = tpu.matmul %1, %7, %cst {dimension_numbers = #tpu.dot_dimension_numbers<[1], [0], [0], [1], [0, 0, 1, 1], [], []>} : vector<32x128xbf16>, vector<128x128xbf16>, vector<32x128xf32> -> vector<32x128xf32>
    %c0_8 = arith.constant 0 : index
    %c0_9 = arith.constant 0 : index
    %c0_10 = arith.constant 0 : index
    %9 = vector.load %arg5[%c0_8, %c0_9, %c0_10] : memref<3x1x128xf32, #tpu.memory_space<vmem>>, vector<1x1x128xf32>
    %10 = vector.shape_cast %9 : vector<1x1x128xf32> to vector<1x128xf32>
    %11 = vector.broadcast %10 : vector<1x128xf32> to vector<32x128xf32>
    %12 = arith.addf %8, %11 : vector<32x128xf32>
    %13 = arith.truncf %12 : vector<32x128xf32> to vector<32x128xbf16>
    %c1 = arith.constant 1 : index
    %c0_11 = arith.constant 0 : index
    %c0_12 = arith.constant 0 : index
    %14 = vector.load %arg4[%c1, %c0_11, %c0_12] : memref<3x128x128xbf16, #tpu.memory_space<vmem>>, vector<1x128x128xbf16>
    %15 = vector.shape_cast %14 : vector<1x128x128xbf16> to vector<128x128xbf16>
    %cst_13 = arith.constant dense<0.000000e+00> : vector<32x128xf32>
    %16 = tpu.matmul %3, %15, %cst_13 {dimension_numbers = #tpu.dot_dimension_numbers<[1], [0], [0], [1], [0, 0, 1, 1], [], []>} : vector<32x128xbf16>, vector<128x128xbf16>, vector<32x128xf32> -> vector<32x128xf32>
    %c1_14 = arith.constant 1 : index
    %c0_15 = arith.constant 0 : index
    %c0_16 = arith.constant 0 : index
    %17 = vector.load %arg5[%c1_14, %c0_15, %c0_16] : memref<3x1x128xf32, #tpu.memory_space<vmem>>, vector<1x1x128xf32>
    %18 = vector.shape_cast %17 : vector<1x1x128xf32> to vector<1x128xf32>
    %19 = vector.broadcast %18 : vector<1x128xf32> to vector<32x128xf32>
    %20 = arith.addf %16, %19 : vector<32x128xf32>
    %21 = arith.truncf %20 : vector<32x128xf32> to vector<32x128xbf16>
    %c2 = arith.constant 2 : index
    %c0_17 = arith.constant 0 : index
    %c0_18 = arith.constant 0 : index
    %22 = vector.load %arg4[%c2, %c0_17, %c0_18] : memref<3x128x128xbf16, #tpu.memory_space<vmem>>, vector<1x128x128xbf16>
    %23 = vector.shape_cast %22 : vector<1x128x128xbf16> to vector<128x128xbf16>
    %cst_19 = arith.constant dense<0.000000e+00> : vector<32x128xf32>
    %24 = tpu.matmul %5, %23, %cst_19 {dimension_numbers = #tpu.dot_dimension_numbers<[1], [0], [0], [1], [0, 0, 1, 1], [], []>} : vector<32x128xbf16>, vector<128x128xbf16>, vector<32x128xf32> -> vector<32x128xf32>
    %c2_20 = arith.constant 2 : index
    %c0_21 = arith.constant 0 : index
    %c0_22 = arith.constant 0 : index
    %25 = vector.load %arg5[%c2_20, %c0_21, %c0_22] : memref<3x1x128xf32, #tpu.memory_space<vmem>>, vector<1x1x128xf32>
    %26 = vector.shape_cast %25 : vector<1x1x128xf32> to vector<1x128xf32>
    %27 = vector.broadcast %26 : vector<1x128xf32> to vector<32x128xf32>
    %28 = arith.addf %24, %27 : vector<32x128xf32>
    %29 = arith.truncf %28 : vector<32x128xf32> to vector<32x128xbf16>
    %30 = vector.shape_cast %13 : vector<32x128xbf16> to vector<2x16x128xbf16>
    %31 = vector.shape_cast %21 : vector<32x128xbf16> to vector<2x16x128xbf16>
    %32 = vector.shape_cast %29 : vector<32x128xbf16> to vector<2x16x128xbf16>
    %c0_23 = arith.constant 0 : index
    %c0_24 = arith.constant 0 : index
    %33 = vector.load %arg6[%c0_23, %c0_24] : memref<128x128xbf16, #tpu.memory_space<vmem>>, vector<128x128xbf16>
    %34 = vector.shape_cast %33 : vector<128x128xbf16> to vector<1x128x128xbf16>
    %35 = vector.shape_cast %34 : vector<1x128x128xbf16> to vector<1x128x128xbf16>
    %36 = vector.broadcast %35 : vector<1x128x128xbf16> to vector<2x128x128xbf16>
    %37 = tpu.concatenate %31, %31, %31, %31, %31, %31, %31, %31 in 1 : vector<2x16x128xbf16>, vector<2x16x128xbf16>, vector<2x16x128xbf16>, vector<2x16x128xbf16>, vector<2x16x128xbf16>, vector<2x16x128xbf16>, vector<2x16x128xbf16>, vector<2x16x128xbf16> -> vector<2x128x128xbf16>
    %38 = arith.mulf %37, %36 : vector<2x128x128xbf16>
    %39 = tpu.concatenate %32, %32, %32, %32, %32, %32, %32, %32 in 1 : vector<2x16x128xbf16>, vector<2x16x128xbf16>, vector<2x16x128xbf16>, vector<2x16x128xbf16>, vector<2x16x128xbf16>, vector<2x16x128xbf16>, vector<2x16x128xbf16>, vector<2x16x128xbf16> -> vector<2x128x128xbf16>
    %40 = arith.mulf %39, %36 : vector<2x128x128xbf16>
    "tpu.trace_start"() <{level = 10 : i32, message = "bsd,bkd->bsk"}> : () -> ()
    %cst_25 = arith.constant dense<0.000000e+00> : vector<2x16x128xf32>
    %41 = tpu.matmul %30, %38, %cst_25 {dimension_numbers = #tpu.dot_dimension_numbers<[2], [2], [1], [1], [0, 0, 0, 1, 1, 1], [0], [0]>} : vector<2x16x128xbf16>, vector<2x128x128xbf16>, vector<2x16x128xf32> -> vector<2x16x128xf32>
    "tpu.trace_stop"() : () -> ()
    %cst_26 = arith.constant dense<0xFF800000> : vector<2x16xf32>
    %42 = vector.multi_reduction <maximumf>, %41, %cst_26 [2] : vector<2x16x128xf32> to vector<2x16xf32>
    %43 = vector.shape_cast %42 : vector<2x16xf32> to vector<2x16x1xf32>
    %44 = vector.broadcast %43 : vector<2x16x1xf32> to vector<2x16x128xf32>
    %45 = arith.subf %41, %44 : vector<2x16x128xf32>
    %46 = math.exp %45 : vector<2x16x128xf32>
    %47 = arith.truncf %46 : vector<2x16x128xf32> to vector<2x16x128xbf16>
    %48 = tpu.concatenate %40, %36 in 2 : vector<2x128x128xbf16>, vector<2x128x128xbf16> -> vector<2x128x256xbf16>
    "tpu.trace_start"() <{level = 10 : i32, message = "bsk,bke->bse"}> : () -> ()
    %cst_27 = arith.constant dense<0.000000e+00> : vector<2x16x256xf32>
    %49 = tpu.matmul %47, %48, %cst_27 {dimension_numbers = #tpu.dot_dimension_numbers<[2], [1], [1], [2], [0, 0, 0, 1, 1, 2], [0], [0]>} : vector<2x16x128xbf16>, vector<2x128x256xbf16>, vector<2x16x256xf32> -> vector<2x16x256xf32>
    "tpu.trace_stop"() : () -> ()
    %50 = vector.extract_strided_slice %49 {offsets = [0, 0, 0], sizes = [2, 16, 128], strides = [1, 1, 1]} : vector<2x16x256xf32> to vector<2x16x128xf32>
    %51 = vector.extract_strided_slice %49 {offsets = [0, 0, 128], sizes = [2, 16, 128], strides = [1, 1, 1]} : vector<2x16x256xf32> to vector<2x16x128xf32>
    %52 = tpu.reciprocal %51 {approx = true} : vector<2x16x128xf32> -> vector<2x16x128xf32>
    %53 = arith.mulf %50, %52 : vector<2x16x128xf32>
    %54 = vector.shape_cast %53 : vector<2x16x128xf32> to vector<32x128xf32>
    %55 = arith.truncf %54 : vector<32x128xf32> to vector<32x128xbf16>
    %c0_28 = arith.constant 0 : index
    %c0_29 = arith.constant 0 : index
    %56 = vector.load %arg7[%c0_28, %c0_29] : memref<128x128xbf16, #tpu.memory_space<vmem>>, vector<128x128xbf16>
    %cst_30 = arith.constant dense<0.000000e+00> : vector<32x128xf32>
    %57 = tpu.matmul %55, %56, %cst_30 {dimension_numbers = #tpu.dot_dimension_numbers<[1], [0], [0], [1], [0, 0, 1, 1], [], []>} : vector<32x128xbf16>, vector<128x128xbf16>, vector<32x128xf32> -> vector<32x128xf32>
    %c0_31 = arith.constant 0 : index
    %c0_32 = arith.constant 0 : index
    %58 = vector.load %arg8[%c0_31, %c0_32] : memref<1x128xf32, #tpu.memory_space<vmem>>, vector<1x128xf32>
    %59 = vector.broadcast %58 : vector<1x128xf32> to vector<32x128xf32>
    %60 = arith.addf %57, %59 : vector<32x128xf32>
    %c0_33 = arith.constant 0 : index
    %c0_34 = arith.constant 0 : index
    %61 = vector.load %arg9[%c0_33, %c0_34] : memref<32x128xf32, #tpu.memory_space<vmem>>, vector<32x128xf32>
    tpu.vector_store %arg9[%c0_33, %c0_34], %60 {strides = array<i32>} : memref<32x128xf32, #tpu.memory_space<vmem>>, vector<32x128xf32>,
    return
  }
  func.func @transform_0(%arg0: i32) -> (i32, i32) {
    %c0_i32 = arith.constant 0 : i32
    %c0_i32_0 = arith.constant 0 : i32
    %c0_i32_1 = arith.constant 0 : i32
    return %c0_i32, %c0_i32_0 : i32, i32
  }
  func.func @transform_1(%arg0: i32) -> (i32, i32) {
    %c0_i32 = arith.constant 0 : i32
    %c0_i32_0 = arith.constant 0 : i32
    %c0_i32_1 = arith.constant 0 : i32
    return %c0_i32, %c0_i32_0 : i32, i32
  }
  func.func @transform_2(%arg0: i32) -> (i32, i32) {
    %c0_i32 = arith.constant 0 : i32
    %c0_i32_0 = arith.constant 0 : i32
    %c0_i32_1 = arith.constant 0 : i32
    return %c0_i32, %c0_i32_0 : i32, i32
  }
  func.func @transform_3(%arg0: i32) -> (i32, i32, i32) {
    %c0_i32 = arith.constant 0 : i32
    %c0_i32_0 = arith.constant 0 : i32
    %c0_i32_1 = arith.constant 0 : i32
    %c0_i32_2 = arith.constant 0 : i32
    return %c0_i32, %c0_i32_0, %c0_i32_1 : i32, i32, i32
  }
  func.func @transform_4(%arg0: i32) -> (i32, i32, i32) {
    %c0_i32 = arith.constant 0 : i32
    %c0_i32_0 = arith.constant 0 : i32
    %c0_i32_1 = arith.constant 0 : i32
    %c0_i32_2 = arith.constant 0 : i32
    return %c0_i32, %c0_i32_0, %c0_i32_1 : i32, i32, i32
  }
  func.func @transform_5(%arg0: i32) -> (i32, i32) {
    %c0_i32 = arith.constant 0 : i32
    %c0_i32_0 = arith.constant 0 : i32
    %c0_i32_1 = arith.constant 0 : i32
    return %c0_i32, %c0_i32_0 : i32, i32
  }
  func.func @transform_6(%arg0: i32) -> (i32, i32) {
    %c0_i32 = arith.constant 0 : i32
    %c0_i32_0 = arith.constant 0 : i32
    %c0_i32_1 = arith.constant 0 : i32
    return %c0_i32, %c0_i32_0 : i32, i32
  }
  func.func @transform_7(%arg0: i32) -> (i32, i32) {
    %c0_i32 = arith.constant 0 : i32
    %c0_i32_0 = arith.constant 0 : i32
    %c0_i32_1 = arith.constant 0 : i32
    return %c0_i32, %c0_i32_0 : i32, i32
  }
  func.func @transform_8(%arg0: i32) -> (i32, i32) {
    %c0_i32 = arith.constant 0 : i32
    %c0_i32_0 = arith.constant 0 : i32
    %c0_i32_1 = arith.constant 0 : i32
    return %c0_i32, %c0_i32_0 : i32, i32
  }
}

</mosaic_0001>

<llo_original>
// kernel: self_attention_pallas.1
$region0: #{self_attention_pallas.1}
  #allocation0 [shape = 'u32[]', space=smem, size = 0x4, offset = 0x4, fixed_abs, tag = 'smem constant byte address 0x4 - core index']
  #allocation1 [shape = 'u32[144,128]{1,0:T(1,128)}', space=vmem, size = 0x12000, scoped, tag = 'internal scratch']
  %s0 = inlined_call_operand.hbm [shape: f32[32,128], index: 0, kind: input, shape index: {}]
  %s1 = inlined_call_operand.hbm [shape: f32[32,128], index: 1, kind: input, shape index: {}]
  %s2 = inlined_call_operand.hbm [shape: f32[32,128], index: 2, kind: input, shape index: {}]
  %s3 = inlined_call_operand.hbm [shape: bf16[3,128,128], index: 3, kind: input, shape index: {}]
  %s4 = inlined_call_operand.vmem [shape: f32[3,1,128], index: 4, kind: input, shape index: {}]
  %s5 = inlined_call_operand.hbm [shape: bf16[128,128], index: 5, kind: input, shape index: {}]
  %s6 = inlined_call_operand.hbm [shape: bf16[128,128], index: 6, kind: input, shape index: {}]
  %s7 = inlined_call_operand.vmem [shape: f32[1,128], index: 7, kind: input, shape index: {}]
  %s8 = inlined_call_operand.hbm [shape: f32[32,128], index: 8, kind: output, shape index: {}]
  %s9 = sld [smem:[#allocation0]]
  $region66: #{self_attention_pallas.1} parent=0
    _
  %s11 = ssub.s32 1, %s9
  %s12 = scalar_select 0, %s11, %s9
  $region1: #{self_attention_pallas.1} parent=0
    #allocation2 [shape = 'u8[16384]{0}', space=vmem, size = 0x4000, scoped, tag = 'input window, operand 0, single buffered']
    #allocation3 [shape = 's32[1]{0}', space=sflag, size = 0x4, scoped, tag = 'scoped memory for self_attention_pallas.1']
    #allocation4 [shape = 's32[1]{0}', space=sflag, size = 0x4, scoped, tag = 'scoped memory for self_attention_pallas.1']
    #allocation5 [shape = 'u8[16384]{0}', space=vmem, size = 0x4000, scoped, tag = 'input window, operand 1, single buffered']
    #allocation6 [shape = 's32[1]{0}', space=sflag, size = 0x4, scoped, tag = 'scoped memory for self_attention_pallas.1']
    #allocation7 [shape = 'u8[16384]{0}', space=vmem, size = 0x4000, scoped, tag = 'input window, operand 2, single buffered']
    #allocation8 [shape = 'u8[98304]{0}', space=vmem, size = 0x18000, scoped, tag = 'input window, operand 3, single buffered']
    #allocation9 [shape = 's32[1]{0}', space=sflag, size = 0x4, scoped, tag = 'scoped memory for self_attention_pallas.1']
    #allocation10 [shape = 'u8[32768]{0}', space=vmem, size = 0x8000, scoped, tag = 'input window, operand 5, single buffered']
    #allocation11 [shape = 'u8[32768]{0}', space=vmem, size = 0x8000, scoped, tag = 'input window, operand 6, single buffered']
    #allocation12 [shape = 's32[1]{0}', space=sflag, size = 0x4, scoped, tag = 'scoped memory for self_attention_pallas.1']
    #allocation13 [shape = 'u8[16384]{0}', space=vmem, size = 0x4000, scoped, tag = 'output window, operand 0, single buffered']
    %13 = vsyncpa [#allocation3], 0
    %14 = vsyncpa [#allocation6], 0
    %15 = vsyncpa [#allocation9], 0
    %16 = vsyncpa [#allocation12], 0
    %17 = vsyncpa [#allocation4], 0
    // Predicated region
    $region2: #{self_attention_pallas.1} parent=1 // pred_check
      _
    $region3: #{self_attention_pallas.1} parent=1 // pred_check_branch
      %19 = sbr.rel (0) target = $region5
    $region4: #{self_attention_pallas.1} parent=1 // pred_region
      %s21 = ssub.s32 512, 512
      %22 = vsyncadd [#allocation3], %s21
      %s23 = sshll.u32 [#allocation2], 4
      %s24 = int_to_ptr.vmem [resolvable:$true] %s23
      %29 = dma.hbm_to_vmem [thread:$0]  %s0, 512, %s24, [#allocation3], 128, 128, 8
    $region5: #{self_attention_pallas.1} parent=1 // pred_fallthru
      _
    // Predicated region
    $region6: #{self_attention_pallas.1} parent=1 // pred_check
      _
    $region7: #{self_attention_pallas.1} parent=1 // pred_check_branch
      %31 = sbr.rel (0) target = $region9
    $region8: #{self_attention_pallas.1} parent=1 // pred_region
      %s33 = ssub.s32 512, 512
      %34 = vsyncadd [#allocation6], %s33
      %s35 = sshll.u32 [#allocation5], 4
      %s36 = int_to_ptr.vmem [resolvable:$true] %s35
      %41 = dma.hbm_to_vmem [thread:$0]  %s1, 512, %s36, [#allocation6], 128, 128, 8
    $region9: #{self_attention_pallas.1} parent=1 // pred_fallthru
      _
    // Predicated region
    $region10: #{self_attention_pallas.1} parent=1 // pred_check
      _
    $region11: #{self_attention_pallas.1} parent=1 // pred_check_branch
      %43 = sbr.rel (0) target = $region13
    $region12: #{self_attention_pallas.1} parent=1 // pred_region
      %s45 = ssub.s32 512, 512
      %46 = vsyncadd [#allocation6], %s45
      %s47 = sshll.u32 [#allocation7], 4
      %s48 = int_to_ptr.vmem [resolvable:$true] %s47
      %53 = dma.hbm_to_vmem [thread:$0]  %s2, 512, %s48, [#allocation6], 128, 128, 8
    $region13: #{self_attention_pallas.1} parent=1 // pred_fallthru
      _
    // Predicated region
    $region14: #{self_attention_pallas.1} parent=1 // pred_check
      _
    $region15: #{self_attention_pallas.1} parent=1 // pred_check_branch
      %55 = sbr.rel (0) target = $region17
    $region16: #{self_attention_pallas.1} parent=1 // pred_region
      %s57 = ssub.s32 3072, 3072
      %58 = vsyncadd [#allocation9], %s57
      %s59 = sshll.u32 [#allocation8], 4
      %s60 = int_to_ptr.vmem [resolvable:$true] %s59
      %65 = dma.hbm_to_vmem [thread:$0]  %s3, 3072, %s60, [#allocation9], 64, 64, 4
    $region17: #{self_attention_pallas.1} parent=1 // pred_fallthru
      _
    // Predicated region
    $region18: #{self_attention_pallas.1} parent=1 // pred_check
      _
    $region19: #{self_attention_pallas.1} parent=1 // pred_check_branch
      %67 = sbr.rel (0) target = $region21
    $region20: #{self_attention_pallas.1} parent=1 // pred_region
      _
    $region21: #{self_attention_pallas.1} parent=1 // pred_fallthru
      _
    // Predicated region
    $region22: #{self_attention_pallas.1} parent=1 // pred_check
      _
    $region23: #{self_attention_pallas.1} parent=1 // pred_check_branch
      %69 = sbr.rel (0) target = $region25
    $region24: #{self_attention_pallas.1} parent=1 // pred_region
      %s71 = ssub.s32 1024, 1024
      %72 = vsyncadd [#allocation9], %s71
      %s73 = sshll.u32 [#allocation10], 4
      %s74 = int_to_ptr.vmem [resolvable:$true] %s73
      %79 = dma.hbm_to_vmem [thread:$0]  %s5, 1024, %s74, [#allocation9], 64, 64, 4
    $region25: #{self_attention_pallas.1} parent=1 // pred_fallthru
      _
    // Predicated region
    $region26: #{self_attention_pallas.1} parent=1 // pred_check
      _
    $region27: #{self_attention_pallas.1} parent=1 // pred_check_branch
      %81 = sbr.rel (0) target = $region29
    $region28: #{self_attention_pallas.1} parent=1 // pred_region
      %s83 = ssub.s32 1024, 1024
      %84 = vsyncadd [#allocation12], %s83
      %s85 = sshll.u32 [#allocation11], 4
      %s86 = int_to_ptr.vmem [resolvable:$true] %s85
      %91 = dma.hbm_to_vmem [thread:$0]  %s6, 1024, %s86, [#allocation12], 64, 64, 4
    $region29: #{self_attention_pallas.1} parent=1 // pred_fallthru
      _
    // Predicated region
    $region30: #{self_attention_pallas.1} parent=1 // pred_check
      _
    $region31: #{self_attention_pallas.1} parent=1 // pred_check_branch
      %93 = sbr.rel (0) target = $region33
    $region32: #{self_attention_pallas.1} parent=1 // pred_region
      _
    $region33: #{self_attention_pallas.1} parent=1 // pred_fallthru
      _
    // Predicated region
    $region34: #{self_attention_pallas.1} parent=1 // pred_check
      _
    $region35: #{self_attention_pallas.1} parent=1 // pred_check_branch
      %95 = sbr.rel (0) target = $region37
    $region36: #{self_attention_pallas.1} parent=1 // pred_region
      %96 = dma.done [#allocation3], 512
    $region37: #{self_attention_pallas.1} parent=1 // pred_fallthru
      _
    // Predicated region
    $region38: #{self_attention_pallas.1} parent=1 // pred_check
      _
    $region39: #{self_attention_pallas.1} parent=1 // pred_check_branch
      %98 = sbr.rel (0) target = $region41
    $region40: #{self_attention_pallas.1} parent=1 // pred_region
      %99 = dma.done [#allocation6], 512
    $region41: #{self_attention_pallas.1} parent=1 // pred_fallthru
      _
    // Predicated region
    $region42: #{self_attention_pallas.1} parent=1 // pred_check
      _
    $region43: #{self_attention_pallas.1} parent=1 // pred_check_branch
      %101 = sbr.rel (0) target = $region45
    $region44: #{self_attention_pallas.1} parent=1 // pred_region
      %102 = dma.done [#allocation6], 512
    $region45: #{self_attention_pallas.1} parent=1 // pred_fallthru
      _
    // Predicated region
    $region46: #{self_attention_pallas.1} parent=1 // pred_check
      _
    $region47: #{self_attention_pallas.1} parent=1 // pred_check_branch
      %104 = sbr.rel (0) target = $region49
    $region48: #{self_attention_pallas.1} parent=1 // pred_region
      %105 = dma.done [#allocation9], 3072
    $region49: #{self_attention_pallas.1} parent=1 // pred_fallthru
      _
    // Predicated region
    $region50: #{self_attention_pallas.1} parent=1 // pred_check
      _
    $region51: #{self_attention_pallas.1} parent=1 // pred_check_branch
      %107 = sbr.rel (0) target = $region53
    $region52: #{self_attention_pallas.1} parent=1 // pred_region
      %108 = dma.done [#allocation9], 1024
    $region53: #{self_attention_pallas.1} parent=1 // pred_fallthru
      _
    // Predicated region
    $region54: #{self_attention_pallas.1} parent=1 // pred_check
      _
    $region55: #{self_attention_pallas.1} parent=1 // pred_check_branch
      %110 = sbr.rel (0) target = $region57
    $region56: #{self_attention_pallas.1} parent=1 // pred_region
      %111 = dma.done [#allocation12], 1024
    $region57: #{self_attention_pallas.1} parent=1 // pred_fallthru
      _
    %v113 = vld [vmem:[#allocation2] sm:$0xff]
    %v114 = vld [vmem:[#allocation2 + $0x8] sm:$0xff]
    %v115 = vld [vmem:[#allocation2 + $0x10] sm:$0xff]
    %v116 = vld [vmem:[#allocation2 + $0x18] sm:$0xff]
    %v117 = vpack.c.bf16 %v114, %v113
    %v118 = vpack.c.bf16 %v116, %v115
    %v119 = vld [vmem:[#allocation5] sm:$0xff]
    %v120 = vld [vmem:[#allocation5 + $0x8] sm:$0xff]
    %v121 = vld [vmem:[#allocation5 + $0x10] sm:$0xff]
    %v122 = vld [vmem:[#allocation5 + $0x18] sm:$0xff]
    %v123 = vpack.c.bf16 %v120, %v119
    %v124 = vpack.c.bf16 %v122, %v121
    %v125 = vld [vmem:[#allocation7] sm:$0xff]
    %v126 = vld [vmem:[#allocation7 + $0x8] sm:$0xff]
    %v127 = vld [vmem:[#allocation7 + $0x10] sm:$0xff]
    %v128 = vld [vmem:[#allocation7 + $0x18] sm:$0xff]
    %v129 = vpack.c.bf16 %v126, %v125
    %v130 = vpack.c.bf16 %v128, %v127
    %v131 = vld [vmem:[#allocation8] sm:$0xf]
    %v132 = vld [vmem:[#allocation8 + $0x4] sm:$0xf]
    %v133 = vld [vmem:[#allocation8 + $0x8] sm:$0xf]
    %v134 = vld [vmem:[#allocation8 + $0xc] sm:$0xf]
    %v135 = vld [vmem:[#allocation8 + $0x10] sm:$0xf]
    %v136 = vld [vmem:[#allocation8 + $0x14] sm:$0xf]
    %v137 = vld [vmem:[#allocation8 + $0x18] sm:$0xf]
    %v138 = vld [vmem:[#allocation8 + $0x1c] sm:$0xf]
    %v139 = vld [vmem:[#allocation8 + $0x20] sm:$0xf]
    %v140 = vld [vmem:[#allocation8 + $0x24] sm:$0xf]
    %v141 = vld [vmem:[#allocation8 + $0x28] sm:$0xf]
    %v142 = vld [vmem:[#allocation8 + $0x2c] sm:$0xf]
    %v143 = vld [vmem:[#allocation8 + $0x30] sm:$0xf]
    %v144 = vld [vmem:[#allocation8 + $0x34] sm:$0xf]
    %v145 = vld [vmem:[#allocation8 + $0x38] sm:$0xf]
    %v146 = vld [vmem:[#allocation8 + $0x3c] sm:$0xf]
    %v147 = vld [vmem:[%s4] sm:$0x1]
    %v149 = vlaneseq
    %v150 = vshrl.u32 %v149, 7
    %v151 = vsub.s32 0, %v150
    %v152 = vrot.slane %v147, %v151
    %v170 = vunpack.c.l.b16 %v131
    %v171 = vunpack.c.l.b16 %v132
    %v172 = vunpack.c.l.b16 %v133
    %v173 = vunpack.c.l.b16 %v134
    %v174 = vunpack.c.l.b16 %v135
    %v175 = vunpack.c.l.b16 %v136
    %v176 = vunpack.c.l.b16 %v137
    %v177 = vunpack.c.l.b16 %v138
    %v178 = vunpack.c.l.b16 %v139
    %v179 = vunpack.c.l.b16 %v140
    %v180 = vunpack.c.l.b16 %v141
    %v181 = vunpack.c.l.b16 %v142
    %v182 = vunpack.c.l.b16 %v143
    %v183 = vunpack.c.l.b16 %v144
    %v184 = vunpack.c.l.b16 %v145
    %v185 = vunpack.c.l.b16 %v146
    %v186 = vpack.c.b16 %v171, %v170
    %v187 = vpack.c.b16 %v173, %v172
    %v188 = vpack.c.b16 %v175, %v174
    %v189 = vpack.c.b16 %v177, %v176
    %v190 = vpack.c.b16 %v179, %v178
    %v191 = vpack.c.b16 %v181, %v180
    %v192 = vpack.c.b16 %v183, %v182
    %v193 = vpack.c.b16 %v185, %v184
    %202 = vmatprep.subr.bf16.mxu0 0
    %203 = vmatpush1.bf16.msra.mxu0 %v186
    %204 = vmatprep.subr.bf16.mxu0 0
    %205 = vmatpush1.bf16.msra.mxu0 %v187
    %206 = vmatprep.subr.bf16.mxu0 0
    %207 = vmatpush1.bf16.msra.mxu0 %v188
    %208 = vmatprep.subr.bf16.mxu0 0
    %209 = vmatpush1.bf16.msra.mxu0 %v189
    %210 = vmatprep.subr.bf16.mxu0 0
    %211 = vmatpush1.bf16.msra.mxu0 %v190
    %212 = vmatprep.subr.bf16.mxu0 0
    %213 = vmatpush1.bf16.msra.mxu0 %v191
    %214 = vmatprep.subr.bf16.mxu0 0
    %215 = vmatpush1.bf16.msra.mxu0 %v192
    %216 = vmatprep.subr.bf16.mxu0 0
    %217 = vmatpush1.bf16.msra.mxu0 %v193
    %218 = vmatprep.subr.bf16.mxu0 0
    %219 = vmatpush1.bf16.msra.mxu0 0
    %220 = vmatprep.subr.bf16.mxu0 0
    %221 = vmatpush1.bf16.msra.mxu0 0
    %222 = vmatprep.subr.bf16.mxu0 0
    %223 = vmatpush1.bf16.msra.mxu0 0
    %224 = vmatprep.subr.bf16.mxu0 0
    %225 = vmatpush1.bf16.msra.mxu0 0
    %226 = vmatprep.subr.bf16.mxu0 0
    %227 = vmatpush1.bf16.msra.mxu0 0
    %228 = vmatprep.subr.bf16.mxu0 0
    %229 = vmatpush1.bf16.msra.mxu0 0
    %230 = vmatprep.subr.bf16.mxu0 0
    %231 = vmatpush1.bf16.msra.mxu0 0
    %232 = vmatprep.subr.bf16.mxu0 0
    %233 = vmatpush1.bf16.msra.mxu0 0
    %234 = vmatprep.mubr.bf16.mxu0 0
    %235 = vmatmul.mubr.bf16.gmra.mrb[0].mxu0 %v117
    %v236 = vpop.f32.mrb[0].mxu0
    %v237 = vadd.f32 %v152, %v236
    %v238 = vpop.f32.mrb[0].mxu0
    %v239 = vpop.f32.mrb[0].mxu0
    %v240 = vadd.f32 %v152, %v239
    %v241 = vpop.f32.mrb[0].mxu0
    %242 = vmatprep.mubr.bf16.mxu0 0
    %243 = vmatmul.mubr.bf16.gmra.mrb[0].mxu0 %v118
    %v244 = vpop.f32.mrb[0].mxu0
    %v245 = vadd.f32 %v152, %v244
    %v246 = vpop.f32.mrb[0].mxu0
    %v247 = vpop.f32.mrb[0].mxu0
    %v248 = vadd.f32 %v152, %v247
    %v249 = vpop.f32.mrb[0].mxu0
    %250 = vdwg.mxu0
    %v251 = vpack.c.bf16 %v240, %v237
    %v252 = vpack.c.bf16 %v248, %v245
    %s253 = scalar_lea.vmem [#allocation8], 64
    %v254 = vld [vmem:[%s253] sm:$0xf]
    %v255 = vld [vmem:[%s253 + $0x4] sm:$0xf]
    %v256 = vld [vmem:[%s253 + $0x8] sm:$0xf]
    %v257 = vld [vmem:[%s253 + $0xc] sm:$0xf]
    %v258 = vld [vmem:[%s253 + $0x10] sm:$0xf]
    %v259 = vld [vmem:[%s253 + $0x14] sm:$0xf]
    %v260 = vld [vmem:[%s253 + $0x18] sm:$0xf]
    %v261 = vld [vmem:[%s253 + $0x1c] sm:$0xf]
    %v262 = vld [vmem:[%s253 + $0x20] sm:$0xf]
    %v263 = vld [vmem:[%s253 + $0x24] sm:$0xf]
    %v264 = vld [vmem:[%s253 + $0x28] sm:$0xf]
    %v265 = vld [vmem:[%s253 + $0x2c] sm:$0xf]
    %v266 = vld [vmem:[%s253 + $0x30] sm:$0xf]
    %v267 = vld [vmem:[%s253 + $0x34] sm:$0xf]
    %v268 = vld [vmem:[%s253 + $0x38] sm:$0xf]
    %v269 = vld [vmem:[%s253 + $0x3c] sm:$0xf]
    %s270 = scalar_lea.vmem %s4, 1
    %v271 = vld [vmem:[%s270] sm:$0x1]
    %v273 = vlaneseq
    %v274 = vshrl.u32 %v273, 7
    %v275 = vsub.s32 0, %v274
    %v276 = vrot.slane %v271, %v275
    %v294 = vunpack.c.l.b16 %v254
    %v295 = vunpack.c.l.b16 %v255
    %v296 = vunpack.c.l.b16 %v256
    %v297 = vunpack.c.l.b16 %v257
    %v298 = vunpack.c.l.b16 %v258
    %v299 = vunpack.c.l.b16 %v259
    %v300 = vunpack.c.l.b16 %v260
    %v301 = vunpack.c.l.b16 %v261
    %v302 = vunpack.c.l.b16 %v262
    %v303 = vunpack.c.l.b16 %v263
    %v304 = vunpack.c.l.b16 %v264
    %v305 = vunpack.c.l.b16 %v265
    %v306 = vunpack.c.l.b16 %v266
    %v307 = vunpack.c.l.b16 %v267
    %v308 = vunpack.c.l.b16 %v268
    %v309 = vunpack.c.l.b16 %v269
    %v310 = vpack.c.b16 %v295, %v294
    %v311 = vpack.c.b16 %v297, %v296
    %v312 = vpack.c.b16 %v299, %v298
    %v313 = vpack.c.b16 %v301, %v300
    %v314 = vpack.c.b16 %v303, %v302
    %v315 = vpack.c.b16 %v305, %v304
    %v316 = vpack.c.b16 %v307, %v306
    %v317 = vpack.c.b16 %v309, %v308
    %326 = vmatprep.subr.bf16.mxu0 0
    %327 = vmatpush1.bf16.msra.mxu0 %v310
    %328 = vmatprep.subr.bf16.mxu0 0
    %329 = vmatpush1.bf16.msra.mxu0 %v311
    %330 = vmatprep.subr.bf16.mxu0 0
    %331 = vmatpush1.bf16.msra.mxu0 %v312
    %332 = vmatprep.subr.bf16.mxu0 0
    %333 = vmatpush1.bf16.msra.mxu0 %v313
    %334 = vmatprep.subr.bf16.mxu0 0
    %335 = vmatpush1.bf16.msra.mxu0 %v314
    %336 = vmatprep.subr.bf16.mxu0 0
    %337 = vmatpush1.bf16.msra.mxu0 %v315
    %338 = vmatprep.subr.bf16.mxu0 0
    %339 = vmatpush1.bf16.msra.mxu0 %v316
    %340 = vmatprep.subr.bf16.mxu0 0
    %341 = vmatpush1.bf16.msra.mxu0 %v317
    %342 = vmatprep.subr.bf16.mxu0 0
    %343 = vmatpush1.bf16.msra.mxu0 0
    %344 = vmatprep.subr.bf16.mxu0 0
    %345 = vmatpush1.bf16.msra.mxu0 0
    %346 = vmatprep.subr.bf16.mxu0 0
    %347 = vmatpush1.bf16.msra.mxu0 0
    %348 = vmatprep.subr.bf16.mxu0 0
    %349 = vmatpush1.bf16.msra.mxu0 0
    %350 = vmatprep.subr.bf16.mxu0 0
    %351 = vmatpush1.bf16.msra.mxu0 0
    %352 = vmatprep.subr.bf16.mxu0 0
    %353 = vmatpush1.bf16.msra.mxu0 0
    %354 = vmatprep.subr.bf16.mxu0 0
    %355 = vmatpush1.bf16.msra.mxu0 0
    %356 = vmatprep.subr.bf16.mxu0 0
    %357 = vmatpush1.bf16.msra.mxu0 0
    %358 = vmatprep.mubr.bf16.mxu0 0
    %359 = vmatmul.mubr.bf16.gmra.mrb[0].mxu0 %v123
    %v360 = vpop.f32.mrb[0].mxu0
    %v361 = vadd.f32 %v276, %v360
    %v362 = vpop.f32.mrb[0].mxu0
    %v363 = vpop.f32.mrb[0].mxu0
    %v364 = vadd.f32 %v276, %v363
    %v365 = vpop.f32.mrb[0].mxu0
    %366 = vmatprep.mubr.bf16.mxu0 0
    %367 = vmatmul.mubr.bf16.gmra.mrb[0].mxu0 %v124
    %v368 = vpop.f32.mrb[0].mxu0
    %v369 = vadd.f32 %v276, %v368
    %v370 = vpop.f32.mrb[0].mxu0
    %v371 = vpop.f32.mrb[0].mxu0
    %v372 = vadd.f32 %v276, %v371
    %v373 = vpop.f32.mrb[0].mxu0
    %374 = vdwg.mxu0
    %v375 = vpack.c.bf16 %v364, %v361
    %v376 = vpack.c.bf16 %v372, %v369
    %s377 = scalar_lea.vmem [#allocation8], 128
    %v378 = vld [vmem:[%s377] sm:$0xf]
    %v379 = vld [vmem:[%s377 + $0x4] sm:$0xf]
    %v380 = vld [vmem:[%s377 + $0x8] sm:$0xf]
    %v381 = vld [vmem:[%s377 + $0xc] sm:$0xf]
    %v382 = vld [vmem:[%s377 + $0x10] sm:$0xf]
    %v383 = vld [vmem:[%s377 + $0x14] sm:$0xf]
    %v384 = vld [vmem:[%s377 + $0x18] sm:$0xf]
    %v385 = vld [vmem:[%s377 + $0x1c] sm:$0xf]
    %v386 = vld [vmem:[%s377 + $0x20] sm:$0xf]
    %v387 = vld [vmem:[%s377 + $0x24] sm:$0xf]
    %v388 = vld [vmem:[%s377 + $0x28] sm:$0xf]
    %v389 = vld [vmem:[%s377 + $0x2c] sm:$0xf]
    %v390 = vld [vmem:[%s377 + $0x30] sm:$0xf]
    %v391 = vld [vmem:[%s377 + $0x34] sm:$0xf]
    %v392 = vld [vmem:[%s377 + $0x38] sm:$0xf]
    %v393 = vld [vmem:[%s377 + $0x3c] sm:$0xf]
    %s394 = scalar_lea.vmem %s4, 2
    %v395 = vld [vmem:[%s394] sm:$0x1]
    %v397 = vlaneseq
    %v398 = vshrl.u32 %v397, 7
    %v399 = vsub.s32 0, %v398
    %v400 = vrot.slane %v395, %v399
    %v418 = vunpack.c.l.b16 %v378
    %v419 = vunpack.c.l.b16 %v379
    %v420 = vunpack.c.l.b16 %v380
    %v421 = vunpack.c.l.b16 %v381
    %v422 = vunpack.c.l.b16 %v382
    %v423 = vunpack.c.l.b16 %v383
    %v424 = vunpack.c.l.b16 %v384
    %v425 = vunpack.c.l.b16 %v385
    %v426 = vunpack.c.l.b16 %v386
    %v427 = vunpack.c.l.b16 %v387
    %v428 = vunpack.c.l.b16 %v388
    %v429 = vunpack.c.l.b16 %v389
    %v430 = vunpack.c.l.b16 %v390
    %v431 = vunpack.c.l.b16 %v391
    %v432 = vunpack.c.l.b16 %v392
    %v433 = vunpack.c.l.b16 %v393
    %v434 = vpack.c.b16 %v419, %v418
    %v435 = vpack.c.b16 %v421, %v420
    %v436 = vpack.c.b16 %v423, %v422
    %v437 = vpack.c.b16 %v425, %v424
    %v438 = vpack.c.b16 %v427, %v426
    %v439 = vpack.c.b16 %v429, %v428
    %v440 = vpack.c.b16 %v431, %v430
    %v441 = vpack.c.b16 %v433, %v432
    %450 = vmatprep.subr.bf16.mxu0 0
    %451 = vmatpush1.bf16.msra.mxu0 %v434
    %452 = vmatprep.subr.bf16.mxu0 0
    %453 = vmatpush1.bf16.msra.mxu0 %v435
    %454 = vmatprep.subr.bf16.mxu0 0
    %455 = vmatpush1.bf16.msra.mxu0 %v436
    %456 = vmatprep.subr.bf16.mxu0 0
    %457 = vmatpush1.bf16.msra.mxu0 %v437
    %458 = vmatprep.subr.bf16.mxu0 0
    %459 = vmatpush1.bf16.msra.mxu0 %v438
    %460 = vmatprep.subr.bf16.mxu0 0
    %461 = vmatpush1.bf16.msra.mxu0 %v439
    %462 = vmatprep.subr.bf16.mxu0 0
    %463 = vmatpush1.bf16.msra.mxu0 %v440
    %464 = vmatprep.subr.bf16.mxu0 0
    %465 = vmatpush1.bf16.msra.mxu0 %v441
    %466 = vmatprep.subr.bf16.mxu0 0
    %467 = vmatpush1.bf16.msra.mxu0 0
    %468 = vmatprep.subr.bf16.mxu0 0
    %469 = vmatpush1.bf16.msra.mxu0 0
    %470 = vmatprep.subr.bf16.mxu0 0
    %471 = vmatpush1.bf16.msra.mxu0 0
    %472 = vmatprep.subr.bf16.mxu0 0
    %473 = vmatpush1.bf16.msra.mxu0 0
    %474 = vmatprep.subr.bf16.mxu0 0
    %475 = vmatpush1.bf16.msra.mxu0 0
    %476 = vmatprep.subr.bf16.mxu0 0
    %477 = vmatpush1.bf16.msra.mxu0 0
    %478 = vmatprep.subr.bf16.mxu0 0
    %479 = vmatpush1.bf16.msra.mxu0 0
    %480 = vmatprep.subr.bf16.mxu0 0
    %481 = vmatpush1.bf16.msra.mxu0 0
    %482 = vmatprep.mubr.bf16.mxu0 0
    %483 = vmatmul.mubr.bf16.gmra.mrb[0].mxu0 %v129
    %v484 = vpop.f32.mrb[0].mxu0
    %v485 = vadd.f32 %v400, %v484
    %v486 = vpop.f32.mrb[0].mxu0
    %v487 = vpop.f32.mrb[0].mxu0
    %v488 = vadd.f32 %v400, %v487
    %v489 = vpop.f32.mrb[0].mxu0
    %490 = vmatprep.mubr.bf16.mxu0 0
    %491 = vmatmul.mubr.bf16.gmra.mrb[0].mxu0 %v130
    %v492 = vpop.f32.mrb[0].mxu0
    %v493 = vadd.f32 %v400, %v492
    %v494 = vpop.f32.mrb[0].mxu0
    %v495 = vpop.f32.mrb[0].mxu0
    %v496 = vadd.f32 %v400, %v495
    %v497 = vpop.f32.mrb[0].mxu0
    %498 = vdwg.mxu0
    %v499 = vpack.c.bf16 %v488, %v485
    %v500 = vpack.c.bf16 %v496, %v493
    %v501 = vld [vmem:[#allocation10] sm:$0xf]
    %v502 = vld [vmem:[#allocation10 + $0x4] sm:$0xf]
    %v503 = vld [vmem:[#allocation10 + $0x8] sm:$0xf]
    %v504 = vld [vmem:[#allocation10 + $0xc] sm:$0xf]
    %v505 = vld [vmem:[#allocation10 + $0x10] sm:$0xf]
    %v506 = vld [vmem:[#allocation10 + $0x14] sm:$0xf]
    %v507 = vld [vmem:[#allocation10 + $0x18] sm:$0xf]
    %v508 = vld [vmem:[#allocation10 + $0x1c] sm:$0xf]
    %v509 = vld [vmem:[#allocation10 + $0x20] sm:$0xf]
    %v510 = vld [vmem:[#allocation10 + $0x24] sm:$0xf]
    %v511 = vld [vmem:[#allocation10 + $0x28] sm:$0xf]
    %v512 = vld [vmem:[#allocation10 + $0x2c] sm:$0xf]
    %v513 = vld [vmem:[#allocation10 + $0x30] sm:$0xf]
    %v514 = vld [vmem:[#allocation10 + $0x34] sm:$0xf]
    %v515 = vld [vmem:[#allocation10 + $0x38] sm:$0xf]
    %v516 = vld [vmem:[#allocation10 + $0x3c] sm:$0xf]
    %v533 = vunpack.c.l.b16 %v501
    %v534 = vunpack.c.l.b16 %v502
    %v535 = vunpack.c.l.b16 %v503
    %v536 = vunpack.c.l.b16 %v504
    %v537 = vunpack.c.l.b16 %v505
    %v538 = vunpack.c.l.b16 %v506
    %v539 = vunpack.c.l.b16 %v507
    %v540 = vunpack.c.l.b16 %v508
    %v541 = vunpack.c.l.b16 %v509
    %v542 = vunpack.c.l.b16 %v510
    %v543 = vunpack.c.l.b16 %v511
    %v544 = vunpack.c.l.b16 %v512
    %v545 = vunpack.c.l.b16 %v513
    %v546 = vunpack.c.l.b16 %v514
    %v547 = vunpack.c.l.b16 %v515
    %v548 = vunpack.c.l.b16 %v516
    %v549 = vpack.c.b16 %v534, %v533
    %v550 = vpack.c.b16 %v536, %v535
    %v551 = vpack.c.b16 %v538, %v537
    %v552 = vpack.c.b16 %v540, %v539
    %v553 = vpack.c.b16 %v542, %v541
    %v554 = vpack.c.b16 %v544, %v543
    %v555 = vpack.c.b16 %v546, %v545
    %v556 = vpack.c.b16 %v548, %v547
    %v565 = vmul.bf16 %v375, %v549
    %v566 = vmul.bf16 %v375, %v550
    %v567 = vmul.bf16 %v375, %v551
    %v568 = vmul.bf16 %v375, %v552
    %v569 = vmul.bf16 %v375, %v553
    %v570 = vmul.bf16 %v375, %v554
    %v571 = vmul.bf16 %v375, %v555
    %v572 = vmul.bf16 %v375, %v556
    %v573 = vmul.bf16 %v376, %v549
    %v574 = vmul.bf16 %v376, %v550
    %v575 = vmul.bf16 %v376, %v551
    %v576 = vmul.bf16 %v376, %v552
    %v577 = vmul.bf16 %v376, %v553
    %v578 = vmul.bf16 %v376, %v554
    %v579 = vmul.bf16 %v376, %v555
    %v580 = vmul.bf16 %v376, %v556
    %v581 = vmul.bf16 %v499, %v549
    %v582 = vmul.bf16 %v499, %v550
    %v583 = vmul.bf16 %v499, %v551
    %v584 = vmul.bf16 %v499, %v552
    %v585 = vmul.bf16 %v499, %v553
    %v586 = vmul.bf16 %v499, %v554
    %v587 = vmul.bf16 %v499, %v555
    %v588 = vmul.bf16 %v499, %v556
    %v589 = vmul.bf16 %v500, %v549
    %v590 = vmul.bf16 %v500, %v550
    %v591 = vmul.bf16 %v500, %v551
    %v592 = vmul.bf16 %v500, %v552
    %v593 = vmul.bf16 %v500, %v553
    %v594 = vmul.bf16 %v500, %v554
    %v595 = vmul.bf16 %v500, %v555
    %v596 = vmul.bf16 %v500, %v556
    %597 = vmatprep.subr.bf16.mxu0 0
    %598 = vmatpush1.bf16.xpose.msra.mxu0 %v565
    %599 = vmatprep.subr.bf16.mxu0 0
    %600 = vmatpush1.bf16.xpose.msra.mxu0 %v566
    %601 = vmatprep.subr.bf16.mxu0 0
    %602 = vmatpush1.bf16.xpose.msra.mxu0 %v567
    %603 = vmatprep.subr.bf16.mxu0 0
    %604 = vmatpush1.bf16.xpose.msra.mxu0 %v568
    %605 = vmatprep.subr.bf16.mxu0 0
    %606 = vmatpush1.bf16.xpose.msra.mxu0 %v569
    %607 = vmatprep.subr.bf16.mxu0 0
    %608 = vmatpush1.bf16.xpose.msra.mxu0 %v570
    %609 = vmatprep.subr.bf16.mxu0 0
    %610 = vmatpush1.bf16.xpose.msra.mxu0 %v571
    %611 = vmatprep.subr.bf16.mxu0 0
    %612 = vmatpush1.bf16.xpose.msra.mxu0 %v572
    %613 = vmatprep.subr.bf16.mxu0 0
    %614 = vmatpush1.bf16.xpose.msra.mxu0 0
    %615 = vmatprep.subr.bf16.mxu0 0
    %616 = vmatpush1.bf16.xpose.msra.mxu0 0
    %617 = vmatprep.subr.bf16.mxu0 0
    %618 = vmatpush1.bf16.xpose.msra.mxu0 0
    %619 = vmatprep.subr.bf16.mxu0 0
    %620 = vmatpush1.bf16.xpose.msra.mxu0 0
    %621 = vmatprep.subr.bf16.mxu0 0
    %622 = vmatpush1.bf16.xpose.msra.mxu0 0
    %623 = vmatprep.subr.bf16.mxu0 0
    %624 = vmatpush1.bf16.xpose.msra.mxu0 0
    %625 = vmatprep.subr.bf16.mxu0 0
    %626 = vmatpush1.bf16.xpose.msra.mxu0 0
    %627 = vmatprep.subr.bf16.mxu0 0
    %628 = vmatpush1.bf16.xpose.msra.mxu0 0
    %629 = vmatprep.mubr.bf16.mxu0 0
    %630 = vmatmul.mubr.bf16.gmra.mrb[0].mxu0 %v251
    %v631 = vpop.f32.mrb[0].mxu0
    %v632 = vadd.f32 0.0, %v631
    %v633 = vpop.f32.mrb[0].mxu0
    %v634 = vpop.f32.mrb[0].mxu0
    %v635 = vadd.f32 0.0, %v634
    %v636 = vpop.f32.mrb[0].mxu0
    %637 = vdwg.mxu0
    %638 = vmatprep.subr.bf16.mxu0 0
    %639 = vmatpush1.bf16.xpose.msra.mxu0 %v573
    %640 = vmatprep.subr.bf16.mxu0 0
    %641 = vmatpush1.bf16.xpose.msra.mxu0 %v574
    %642 = vmatprep.subr.bf16.mxu0 0
    %643 = vmatpush1.bf16.xpose.msra.mxu0 %v575
    %644 = vmatprep.subr.bf16.mxu0 0
    %645 = vmatpush1.bf16.xpose.msra.mxu0 %v576
    %646 = vmatprep.subr.bf16.mxu0 0
    %647 = vmatpush1.bf16.xpose.msra.mxu0 %v577
    %648 = vmatprep.subr.bf16.mxu0 0
    %649 = vmatpush1.bf16.xpose.msra.mxu0 %v578
    %650 = vmatprep.subr.bf16.mxu0 0
    %651 = vmatpush1.bf16.xpose.msra.mxu0 %v579
    %652 = vmatprep.subr.bf16.mxu0 0
    %653 = vmatpush1.bf16.xpose.msra.mxu0 %v580
    %654 = vmatprep.subr.bf16.mxu0 0
    %655 = vmatpush1.bf16.xpose.msra.mxu0 0
    %656 = vmatprep.subr.bf16.mxu0 0
    %657 = vmatpush1.bf16.xpose.msra.mxu0 0
    %658 = vmatprep.subr.bf16.mxu0 0
    %659 = vmatpush1.bf16.xpose.msra.mxu0 0
    %660 = vmatprep.subr.bf16.mxu0 0
    %661 = vmatpush1.bf16.xpose.msra.mxu0 0
    %662 = vmatprep.subr.bf16.mxu0 0
    %663 = vmatpush1.bf16.xpose.msra.mxu0 0
    %664 = vmatprep.subr.bf16.mxu0 0
    %665 = vmatpush1.bf16.xpose.msra.mxu0 0
    %666 = vmatprep.subr.bf16.mxu0 0
    %667 = vmatpush1.bf16.xpose.msra.mxu0 0
    %668 = vmatprep.subr.bf16.mxu0 0
    %669 = vmatpush1.bf16.xpose.msra.mxu0 0
    %670 = vmatprep.mubr.bf16.mxu0 0
    %671 = vmatmul.mubr.bf16.gmra.mrb[0].mxu0 %v252
    %v672 = vpop.f32.mrb[0].mxu0
    %v673 = vadd.f32 0.0, %v672
    %v674 = vpop.f32.mrb[0].mxu0
    %v675 = vpop.f32.mrb[0].mxu0
    %v676 = vadd.f32 0.0, %v675
    %v677 = vpop.f32.mrb[0].mxu0
    %678 = vdwg.mxu0
    %679 = vmax.xlane.f32.xlu0 %v632
    %v680 = vpop.xlane.xlu0 %679
    %681 = vmax.xlane.f32.xlu0 %v635
    %v682 = vpop.xlane.xlu0 %681
    %683 = vmax.xlane.f32.xlu0 %v673
    %v684 = vpop.xlane.xlu0 %683
    %685 = vmax.xlane.f32.xlu0 %v676
    %v686 = vpop.xlane.xlu0 %685
    %v687 = vsub.f32 %v632, %v680
    %v688 = vsub.f32 %v635, %v682
    %v689 = vsub.f32 %v673, %v684
    %v690 = vsub.f32 %v676, %v686
    %v691 = vmul.f32 %v687, 1.442695
    %v692 = vpow.pop %v691
    %v693 = vmul.f32 %v688, 1.442695
    %v694 = vpow.pop %v693
    %v695 = vmul.f32 %v689, 1.442695
    %v696 = vpow.pop %v695
    %v697 = vmul.f32 %v690, 1.442695
    %v698 = vpow.pop %v697
    %v699 = vpack.c.bf16 %v694, %v692
    %v700 = vpack.c.bf16 %v698, %v696
    %701 = vmatprep.subr.bf16.mxu0 %v549
    %702 = vmatpush1.bf16.msra.mxu0 %v581
    %703 = vmatprep.subr.bf16.mxu0 %v550
    %704 = vmatpush1.bf16.msra.mxu0 %v582
    %705 = vmatprep.subr.bf16.mxu0 %v551
    %706 = vmatpush1.bf16.msra.mxu0 %v583
    %707 = vmatprep.subr.bf16.mxu0 %v552
    %708 = vmatpush1.bf16.msra.mxu0 %v584
    %709 = vmatprep.subr.bf16.mxu0 %v553
    %710 = vmatpush1.bf16.msra.mxu0 %v585
    %711 = vmatprep.subr.bf16.mxu0 %v554
    %712 = vmatpush1.bf16.msra.mxu0 %v586
    %713 = vmatprep.subr.bf16.mxu0 %v555
    %714 = vmatpush1.bf16.msra.mxu0 %v587
    %715 = vmatprep.subr.bf16.mxu0 %v556
    %716 = vmatpush1.bf16.msra.mxu0 %v588
    %717 = vmatprep.subr.bf16.mxu0 0
    %718 = vmatpush1.bf16.msra.mxu0 0
    %719 = vmatprep.subr.bf16.mxu0 0
    %720 = vmatpush1.bf16.msra.mxu0 0
    %721 = vmatprep.subr.bf16.mxu0 0
    %722 = vmatpush1.bf16.msra.mxu0 0
    %723 = vmatprep.subr.bf16.mxu0 0
    %724 = vmatpush1.bf16.msra.mxu0 0
    %725 = vmatprep.subr.bf16.mxu0 0
    %726 = vmatpush1.bf16.msra.mxu0 0
    %727 = vmatprep.subr.bf16.mxu0 0
    %728 = vmatpush1.bf16.msra.mxu0 0
    %729 = vmatprep.subr.bf16.mxu0 0
    %730 = vmatpush1.bf16.msra.mxu0 0
    %731 = vmatprep.subr.bf16.mxu0 0
    %732 = vmatpush1.bf16.msra.mxu0 0
    %733 = vmatprep.mubr.bf16.mxu0 0
    %734 = vmatmul.mubr.bf16.gmra.mrb[0].mxu0 %v699
    %v735 = vpop.f32.mrb[0].mxu0
    %v736 = vadd.f32 0.0, %v735
    %v737 = vpop.f32.mrb[0].mxu0
    %v738 = vadd.f32 0.0, %v737
    %v739 = vpop.f32.mrb[0].mxu0
    %v740 = vadd.f32 0.0, %v739
    %v741 = vpop.f32.mrb[0].mxu0
    %v742 = vadd.f32 0.0, %v741
    %743 = vdwg.mxu0
    %744 = vmatprep.subr.bf16.mxu0 %v549
    %745 = vmatpush1.bf16.msra.mxu0 %v589
    %746 = vmatprep.subr.bf16.mxu0 %v550
    %747 = vmatpush1.bf16.msra.mxu0 %v590
    %748 = vmatprep.subr.bf16.mxu0 %v551
    %749 = vmatpush1.bf16.msra.mxu0 %v591
    %750 = vmatprep.subr.bf16.mxu0 %v552
    %751 = vmatpush1.bf16.msra.mxu0 %v592
    %752 = vmatprep.subr.bf16.mxu0 %v553
    %753 = vmatpush1.bf16.msra.mxu0 %v593
    %754 = vmatprep.subr.bf16.mxu0 %v554
    %755 = vmatpush1.bf16.msra.mxu0 %v594
    %756 = vmatprep.subr.bf16.mxu0 %v555
    %757 = vmatpush1.bf16.msra.mxu0 %v595
    %758 = vmatprep.subr.bf16.mxu0 %v556
    %759 = vmatpush1.bf16.msra.mxu0 %v596
    %760 = vmatprep.subr.bf16.mxu0 0
    %761 = vmatpush1.bf16.msra.mxu0 0
    %762 = vmatprep.subr.bf16.mxu0 0
    %763 = vmatpush1.bf16.msra.mxu0 0
    %764 = vmatprep.subr.bf16.mxu0 0
    %765 = vmatpush1.bf16.msra.mxu0 0
    %766 = vmatprep.subr.bf16.mxu0 0
    %767 = vmatpush1.bf16.msra.mxu0 0
    %768 = vmatprep.subr.bf16.mxu0 0
    %769 = vmatpush1.bf16.msra.mxu0 0
    %770 = vmatprep.subr.bf16.mxu0 0
    %771 = vmatpush1.bf16.msra.mxu0 0
    %772 = vmatprep.subr.bf16.mxu0 0
    %773 = vmatpush1.bf16.msra.mxu0 0
    %774 = vmatprep.subr.bf16.mxu0 0
    %775 = vmatpush1.bf16.msra.mxu0 0
    %776 = vmatprep.mubr.bf16.mxu0 0
    %777 = vmatmul.mubr.bf16.gmra.mrb[0].mxu0 %v700
    %v778 = vpop.f32.mrb[0].mxu0
    %v779 = vadd.f32 0.0, %v778
    %v780 = vpop.f32.mrb[0].mxu0
    %v781 = vadd.f32 0.0, %v780
    %v782 = vpop.f32.mrb[0].mxu0
    %v783 = vadd.f32 0.0, %v782
    %v784 = vpop.f32.mrb[0].mxu0
    %v785 = vadd.f32 0.0, %v784
    %786 = vdwg.mxu0
    %v787 = vrcp.pop %v738
    %v788 = vrcp.pop %v742
    %v789 = vrcp.pop %v781
    %v790 = vrcp.pop %v785
    %v791 = vmul.f32 %v736, %v787
    %v792 = vmul.f32 %v740, %v788
    %v793 = vmul.f32 %v779, %v789
    %v794 = vmul.f32 %v783, %v790
    %v795 = vpack.c.bf16 %v792, %v791
    %v796 = vpack.c.bf16 %v794, %v793
    %v797 = vld [vmem:[#allocation11] sm:$0xf]
    %v798 = vld [vmem:[#allocation11 + $0x4] sm:$0xf]
    %v799 = vld [vmem:[#allocation11 + $0x8] sm:$0xf]
    %v800 = vld [vmem:[#allocation11 + $0xc] sm:$0xf]
    %v801 = vld [vmem:[#allocation11 + $0x10] sm:$0xf]
    %v802 = vld [vmem:[#allocation11 + $0x14] sm:$0xf]
    %v803 = vld [vmem:[#allocation11 + $0x18] sm:$0xf]
    %v804 = vld [vmem:[#allocation11 + $0x1c] sm:$0xf]
    %v805 = vld [vmem:[#allocation11 + $0x20] sm:$0xf]
    %v806 = vld [vmem:[#allocation11 + $0x24] sm:$0xf]
    %v807 = vld [vmem:[#allocation11 + $0x28] sm:$0xf]
    %v808 = vld [vmem:[#allocation11 + $0x2c] sm:$0xf]
    %v809 = vld [vmem:[#allocation11 + $0x30] sm:$0xf]
    %v810 = vld [vmem:[#allocation11 + $0x34] sm:$0xf]
    %v811 = vld [vmem:[#allocation11 + $0x38] sm:$0xf]
    %v812 = vld [vmem:[#allocation11 + $0x3c] sm:$0xf]
    %v813 = vld [vmem:[%s7] sm:$0x1]
    %v815 = vlaneseq
    %v816 = vshrl.u32 %v815, 7
    %v817 = vsub.s32 0, %v816
    %v818 = vrot.slane %v813, %v817
    %v836 = vunpack.c.l.b16 %v797
    %v837 = vunpack.c.l.b16 %v798
    %v838 = vunpack.c.l.b16 %v799
    %v839 = vunpack.c.l.b16 %v800
    %v840 = vunpack.c.l.b16 %v801
    %v841 = vunpack.c.l.b16 %v802
    %v842 = vunpack.c.l.b16 %v803
    %v843 = vunpack.c.l.b16 %v804
    %v844 = vunpack.c.l.b16 %v805
    %v845 = vunpack.c.l.b16 %v806
    %v846 = vunpack.c.l.b16 %v807
    %v847 = vunpack.c.l.b16 %v808
    %v848 = vunpack.c.l.b16 %v809
    %v849 = vunpack.c.l.b16 %v810
    %v850 = vunpack.c.l.b16 %v811
    %v851 = vunpack.c.l.b16 %v812
    %v852 = vpack.c.b16 %v837, %v836
    %v853 = vpack.c.b16 %v839, %v838
    %v854 = vpack.c.b16 %v841, %v840
    %v855 = vpack.c.b16 %v843, %v842
    %v856 = vpack.c.b16 %v845, %v844
    %v857 = vpack.c.b16 %v847, %v846
    %v858 = vpack.c.b16 %v849, %v848
    %v859 = vpack.c.b16 %v851, %v850
    %868 = vmatprep.subr.bf16.mxu0 0
    %869 = vmatpush1.bf16.msra.mxu0 %v852
    %870 = vmatprep.subr.bf16.mxu0 0
    %871 = vmatpush1.bf16.msra.mxu0 %v853
    %872 = vmatprep.subr.bf16.mxu0 0
    %873 = vmatpush1.bf16.msra.mxu0 %v854
    %874 = vmatprep.subr.bf16.mxu0 0
    %875 = vmatpush1.bf16.msra.mxu0 %v855
    %876 = vmatprep.subr.bf16.mxu0 0
    %877 = vmatpush1.bf16.msra.mxu0 %v856
    %878 = vmatprep.subr.bf16.mxu0 0
    %879 = vmatpush1.bf16.msra.mxu0 %v857
    %880 = vmatprep.subr.bf16.mxu0 0
    %881 = vmatpush1.bf16.msra.mxu0 %v858
    %882 = vmatprep.subr.bf16.mxu0 0
    %883 = vmatpush1.bf16.msra.mxu0 %v859
    %884 = vmatprep.subr.bf16.mxu0 0
    %885 = vmatpush1.bf16.msra.mxu0 0
    %886 = vmatprep.subr.bf16.mxu0 0
    %887 = vmatpush1.bf16.msra.mxu0 0
    %888 = vmatprep.subr.bf16.mxu0 0
    %889 = vmatpush1.bf16.msra.mxu0 0
    %890 = vmatprep.subr.bf16.mxu0 0
    %891 = vmatpush1.bf16.msra.mxu0 0
    %892 = vmatprep.subr.bf16.mxu0 0
    %893 = vmatpush1.bf16.msra.mxu0 0
    %894 = vmatprep.subr.bf16.mxu0 0
    %895 = vmatpush1.bf16.msra.mxu0 0
    %896 = vmatprep.subr.bf16.mxu0 0
    %897 = vmatpush1.bf16.msra.mxu0 0
    %898 = vmatprep.subr.bf16.mxu0 0
    %899 = vmatpush1.bf16.msra.mxu0 0
    %900 = vmatprep.mubr.bf16.mxu0 0
    %901 = vmatmul.mubr.bf16.gmra.mrb[0].mxu0 %v795
    %v902 = vpop.f32.mrb[0].mxu0
    %v903 = vadd.f32 %v818, %v902
    %v904 = vpop.f32.mrb[0].mxu0
    %v905 = vpop.f32.mrb[0].mxu0
    %v906 = vadd.f32 %v818, %v905
    %v907 = vpop.f32.mrb[0].mxu0
    %908 = vmatprep.mubr.bf16.mxu0 0
    %909 = vmatmul.mubr.bf16.gmra.mrb[0].mxu0 %v796
    %v910 = vpop.f32.mrb[0].mxu0
    %v911 = vadd.f32 %v818, %v910
    %v912 = vpop.f32.mrb[0].mxu0
    %v913 = vpop.f32.mrb[0].mxu0
    %v914 = vadd.f32 %v818, %v913
    %v915 = vpop.f32.mrb[0].mxu0
    %916 = vdwg.mxu0
    %917 = vst [vmem:[#allocation13] sm:$0xff] %v903
    %918 = vst [vmem:[#allocation13 + $0x8] sm:$0xff] %v906
    %919 = vst [vmem:[#allocation13 + $0x10] sm:$0xff] %v911
    %920 = vst [vmem:[#allocation13 + $0x18] sm:$0xff] %v914
    // Predicated region
    $region58: #{self_attention_pallas.1} parent=1 // pred_check
      _
    $region59: #{self_attention_pallas.1} parent=1 // pred_check_branch
      %922 = sbr.rel (0) target = $region61
    $region60: #{self_attention_pallas.1} parent=1 // pred_region
      %s924 = ssub.s32 512, 512
      %925 = vsyncadd [#allocation4], %s924
      %s926 = sshll.u32 [#allocation13], 4
      %s927 = int_to_ptr.vmem [resolvable:$true] %s926
      %932 = dma.vmem_to_hbm [thread:$0]  %s927, 512, %s8, [#allocation4], 128, 128, 8
    $region61: #{self_attention_pallas.1} parent=1 // pred_fallthru
      _
    // Predicated region
    $region62: #{self_attention_pallas.1} parent=1 // pred_check
      _
    $region63: #{self_attention_pallas.1} parent=1 // pred_check_branch
      %934 = sbr.rel (0) target = $region65
    $region64: #{self_attention_pallas.1} parent=1 // pred_region
      %935 = dma.done [#allocation4], 512
    $region65: #{self_attention_pallas.1} parent=1 // pred_fallthru
      _
    %936 = vsyncpa [#allocation3], 1
    %937 = vsyncpa [#allocation6], 1
    %938 = vsyncpa [#allocation9], 1
    %939 = vsyncpa [#allocation12], 1
    %940 = vsyncpa [#allocation4], 1

</llo_original>
